<compile_context>
chip_gen: v7x
topology: tpu7x:2x2x1
jax: 0.10.0
libtpu: 0.0.40
codegen_flags: <defaults>
</compile_context>

<pallas_src>
import functools

import jax
import jax.numpy as jnp
import numpy as np
from jax.experimental import pallas as pl
from jax.experimental.pallas import tpu as pltpu


def _epilogue_kernel(x_ref, noise_ref, p_ref, o_ref, *, eps, inv_hw):
    x = x_ref[0]                       # (TC, HW)  spatial on lanes
    noise = noise_ref[...]             # (1, HW)   shared noise row
    p = p_ref[0]                       # (TC, 4)   packed per-channel scalars
    nw = p[:, 0:1]                     # noise strength
    b = p[:, 1:2]                      # bias
    sc = p[:, 2:3]                     # style scale (+1 already folded in)
    sh = p[:, 3:4]                     # style shift

    # NoiseApplyingLayer + bias + LeakyReLU(0.2)  (pure VPU; max instead of
    # compare+select)
    y = x + noise * nw + b
    y = jnp.maximum(y, 0.2 * y)

    # InstanceNormLayer: single-pass per-channel stats over the lane axis.
    mean = jnp.sum(y, axis=-1, keepdims=True) * inv_hw          # (TC, 1)
    msq = jnp.sum(y * y, axis=-1, keepdims=True) * inv_hw       # (TC, 1)
    var = jnp.maximum(msq - mean * mean, 0.0)
    yn = (y - mean) * jax.lax.rsqrt(var + eps)

    # StyleModulationLayer (style already computed in the wrapper).
    o_ref[0] = (yn * sc + sh).astype(o_ref.dtype)


def _pick_channel_tile(c, hw, itemsize=4, target_bytes=2 << 20):
    """Largest multiple-of-8 divisor of C whose (TC, HW) tile fits the target."""
    cands = [tc for tc in range(8, c + 1, 8) if c % tc == 0]
    if not cands:
        return c                      # tiny C: block == full dim is legal
    for tc in sorted(cands, reverse=True):
        if tc * hw * itemsize <= target_bytes:
            return tc
    return cands[0]                   # nothing fits: smallest legal tile


def epilogue_block(x_nchw, w_latent, noise, noise_weight, bias,
                   dense_weight, wscale_bias, *, eps=1e-8, channel_tile=None):
    """Pallas forward of StyleGAN EpilogueBlock (instance norm, buffer noise).

    x_nchw:       (N, C, H, W) f32 activations
    w_latent:     (N, D) f32 latent codes
    noise:        (1, 1, H, W) f32 registered noise buffer
    noise_weight: (C,)  per-channel noise strength (NoiseApplyingLayer.weight)
    bias:         (C,)  per-channel bias (EpilogueBlock.bias)
    dense_weight: (2C, D) nn.Linear weight of the style dense (bias=False)
    wscale_bias:  (2C,)  trainable WScale bias of the style dense
    """
    n, c, h, w = x_nchw.shape
    hw = h * w
    d = w_latent.shape[1]

    # Free reshapes only — stay in native NCHW memory order (HW on lanes).
    x3 = x_nchw.reshape(n, c, hw)
    noise2 = noise.reshape(1, hw)

    # Style dense hoisted to a tiny XLA einsum (MXU). WScale: gain=1, lr=1,
    # scale = 1/sqrt(D); the "+1" of style_mod is folded into the scale term.
    style = (jnp.einsum("nd,kd->nk", w_latent, dense_weight,
                        precision=jax.lax.Precision.HIGHEST)
             * (1.0 / np.sqrt(d)) + wscale_bias)                  # (N, 2C)
    s_scale_p1 = style[:, :c] + 1.0
    s_shift = style[:, c:]

    # Pack all per-(image, channel) scalars into one (N, C, 4) array:
    # [noise_w, bias, style_scale+1, style_shift]
    params = jnp.stack(
        [jnp.broadcast_to(noise_weight[None, :], (n, c)),
         jnp.broadcast_to(bias[None, :], (n, c)),
         s_scale_p1, s_shift], axis=-1).astype(jnp.float32)       # (N, C, 4)

    tc = channel_tile if channel_tile is not None else _pick_channel_tile(c, hw)
    assert c % tc == 0
    grid = (n, c // tc)

    itemsize = np.dtype(x3.dtype).itemsize
    tile_bytes = tc * hw * itemsize
    # in + out double-buffered, plus the tiny constant blocks, plus slack.
    vmem_need = 4 * tile_bytes + 2 * hw * 4 + 2 * tc * 16 + (1 << 20)
    vmem_limit = int(min(max(2 * vmem_need, 16 << 20), 48 << 20))

    out3 = pl.pallas_call(
        functools.partial(_epilogue_kernel, eps=eps, inv_hw=1.0 / hw),
        out_shape=jax.ShapeDtypeStruct((n, c, hw), x_nchw.dtype),
        grid_spec=pltpu.PrefetchScalarGridSpec(
            num_scalar_prefetch=0,
            grid=grid,
            in_specs=[
                pl.BlockSpec((1, tc, hw), lambda i, j: (i, j, 0)),  # x slab
                pl.BlockSpec((1, hw), lambda i, j: (0, 0)),         # noise row
                pl.BlockSpec((1, tc, 4), lambda i, j: (i, j, 0)),   # packed scalars
            ],
            out_specs=pl.BlockSpec((1, tc, hw), lambda i, j: (i, j, 0)),
        ),
        compiler_params=pltpu.CompilerParams(
            dimension_semantics=("parallel", "parallel"),
            vmem_limit_bytes=vmem_limit),
    )(x3, noise2, params)

    return out3.reshape(n, c, h, w)


def _reference(x, w_latent, noise, noise_weight, bias, dense_weight,
               wscale_bias, eps):
    """Pure-JAX reference mirroring the PyTorch EpilogueBlock forward."""
    n, c, _, _ = x.shape
    d = w_latent.shape[1]
    y = x + noise * noise_weight.reshape(1, c, 1, 1)
    y = y + bias.reshape(1, c, 1, 1)
    y = jnp.where(y >= 0, y, 0.2 * y)
    y = y - jnp.mean(y, axis=(2, 3), keepdims=True)
    y = y / jnp.sqrt(jnp.mean(y * y, axis=(2, 3), keepdims=True) + eps)
    style = (jnp.einsum("nd,kd->nk", w_latent, dense_weight,
                        precision=jax.lax.Precision.HIGHEST)
             * (1.0 / np.sqrt(d)) + wscale_bias)                  # (N, 2C)
    s_scale = style[:, :c].reshape(n, c, 1, 1)
    s_shift = style[:, c:].reshape(n, c, 1, 1)
    return y * (s_scale + 1.0) + s_shift


if __name__ == "__main__":
    key = jax.random.PRNGKey(0)
    EPS = 1e-8
    D = 512                             # w_space_dim (StyleGAN default)

    # Case 1: layer_idx=4 -> res=16, tiny C (block == full channel dim).
    # Case 2: C multiple of 8 with an explicit channel tile -> grid (N, 2).
    cases = [
        dict(N=2, C=4, H=16, W=16, channel_tile=None),
        dict(N=2, C=16, H=8, W=8, channel_tile=8),
    ]

    for case in cases:
        N, C, H, W = case["N"], case["C"], case["H"], case["W"]
        keys = jax.random.split(jax.random.fold_in(key, C), 6)

        x = jax.random.normal(keys[0], (N, C, H, W), dtype=jnp.float32)
        w_latent = jax.random.normal(keys[1], (N, D), dtype=jnp.float32)
        noise = jax.random.normal(keys[2], (1, 1, H, W), dtype=jnp.float32)
        # These parameters are zero-initialized in the module; use small
        # nonzero values so the test exercises the full math path.
        noise_weight = jax.random.normal(keys[3], (C,), dtype=jnp.float32) * 0.1
        bias = jax.random.normal(keys[4], (C,), dtype=jnp.float32) * 0.1
        dense_weight = jax.random.normal(keys[5], (2 * C, D),
                                         dtype=jnp.float32) * 0.1
        wscale_bias = jnp.linspace(-0.05, 0.05, 2 * C, dtype=jnp.float32)

        out = epilogue_block(x, w_latent, noise, noise_weight, bias,
                             dense_weight, wscale_bias, eps=EPS,
                             channel_tile=case["channel_tile"])
        out = jax.block_until_ready(out)

        ref = _reference(x, w_latent, noise, noise_weight, bias,
                         dense_weight, wscale_bias, EPS)
        np.testing.assert_allclose(np.asarray(out), np.asarray(ref),
                                   rtol=1e-4, atol=1e-5)

    print("KERNEL_OK")
</pallas_src>

<mosaic_0001>
module attributes {stable_mosaic.version = 11 : i64} {
  func.func @_epilogue_kernel(%arg0: i32, %arg1: i32, %arg2: memref<1x4x256xf32, #tpu.memory_space<vmem>>, %arg3: memref<1x256xf32, #tpu.memory_space<vmem>>, %arg4: memref<1x4x4xf32, #tpu.memory_space<vmem>>, %arg5: memref<1x4x256xf32, #tpu.memory_space<vmem>>) attributes {dimension_semantics = [#tpu.dimension_semantics<parallel>, #tpu.dimension_semantics<parallel>], iteration_bounds = array<i64: 2, 1>, scalar_prefetch = 0 : i64, scratch_operands = 0 : i64, tpu.core_type = #tpu.core_type<tc>, window_params = [{transform_indices = @transform_0, window_bounds = array<i64: 1, 4, 256>}, {pipeline_mode = #tpu.pipeline_mode<synchronous>, transform_indices = @transform_1, window_bounds = array<i64: 1, 256>}, {transform_indices = @transform_2, window_bounds = array<i64: 1, 4, 4>}, {transform_indices = @transform_3, window_bounds = array<i64: 1, 4, 256>}]} {
    %c0 = arith.constant 0 : index
    %c0_0 = arith.constant 0 : index
    %c0_1 = arith.constant 0 : index
    %0 = vector.load %arg2[%c0, %c0_0, %c0_1] : memref<1x4x256xf32, #tpu.memory_space<vmem>>, vector<1x4x256xf32>
    %1 = vector.shape_cast %0 : vector<1x4x256xf32> to vector<4x256xf32>
    %c0_2 = arith.constant 0 : index
    %c0_3 = arith.constant 0 : index
    %2 = vector.load %arg3[%c0_2, %c0_3] : memref<1x256xf32, #tpu.memory_space<vmem>>, vector<1x256xf32>
    %c0_4 = arith.constant 0 : index
    %c0_5 = arith.constant 0 : index
    %c0_6 = arith.constant 0 : index
    %3 = vector.load %arg4[%c0_4, %c0_5, %c0_6] : memref<1x4x4xf32, #tpu.memory_space<vmem>>, vector<1x4x4xf32>
    %4 = vector.shape_cast %3 : vector<1x4x4xf32> to vector<4x4xf32>
    %5 = vector.extract_strided_slice %4 {offsets = [0, 0], sizes = [4, 1], strides = [1, 1]} : vector<4x4xf32> to vector<4x1xf32>
    %6 = vector.extract_strided_slice %4 {offsets = [0, 1], sizes = [4, 1], strides = [1, 1]} : vector<4x4xf32> to vector<4x1xf32>
    %7 = vector.extract_strided_slice %4 {offsets = [0, 2], sizes = [4, 1], strides = [1, 1]} : vector<4x4xf32> to vector<4x1xf32>
    %8 = vector.extract_strided_slice %4 {offsets = [0, 3], sizes = [4, 1], strides = [1, 1]} : vector<4x4xf32> to vector<4x1xf32>
    %9 = vector.broadcast %2 : vector<1x256xf32> to vector<4x256xf32>
    %10 = vector.broadcast %5 : vector<4x1xf32> to vector<4x256xf32>
    %11 = arith.mulf %9, %10 : vector<4x256xf32>
    %12 = arith.addf %1, %11 : vector<4x256xf32>
    %13 = vector.broadcast %6 : vector<4x1xf32> to vector<4x256xf32>
    %14 = arith.addf %12, %13 : vector<4x256xf32>
    %cst = arith.constant 2.000000e-01 : f32
    %15 = vector.broadcast %cst : f32 to vector<4x256xf32>
    %16 = arith.mulf %15, %14 : vector<4x256xf32>
    %17 = arith.maximumf %14, %16 : vector<4x256xf32>
    %cst_7 = arith.constant dense<0.000000e+00> : vector<4xf32>
    %18 = vector.multi_reduction <add>, %17, %cst_7 [1] : vector<4x256xf32> to vector<4xf32>
    %19 = vector.shape_cast %18 : vector<4xf32> to vector<4x1xf32>
    %cst_8 = arith.constant 3.906250e-03 : f32
    %20 = vector.broadcast %cst_8 : f32 to vector<4x1xf32>
    %21 = arith.mulf %19, %20 : vector<4x1xf32>
    %22 = arith.mulf %17, %17 : vector<4x256xf32>
    %cst_9 = arith.constant dense<0.000000e+00> : vector<4xf32>
    %23 = vector.multi_reduction <add>, %22, %cst_9 [1] : vector<4x256xf32> to vector<4xf32>
    %24 = vector.shape_cast %23 : vector<4xf32> to vector<4x1xf32>
    %cst_10 = arith.constant 3.906250e-03 : f32
    %25 = vector.broadcast %cst_10 : f32 to vector<4x1xf32>
    %26 = arith.mulf %24, %25 : vector<4x1xf32>
    %27 = arith.mulf %21, %21 : vector<4x1xf32>
    %28 = arith.subf %26, %27 : vector<4x1xf32>
    %cst_11 = arith.constant 0.000000e+00 : f32
    %29 = vector.broadcast %cst_11 : f32 to vector<4x1xf32>
    %30 = arith.maximumf %28, %29 : vector<4x1xf32>
    %31 = vector.broadcast %21 : vector<4x1xf32> to vector<4x256xf32>
    %32 = arith.subf %17, %31 : vector<4x256xf32>
    %cst_12 = arith.constant 9.99999993E-9 : f32
    %33 = vector.broadcast %cst_12 : f32 to vector<4x1xf32>
    %34 = arith.addf %30, %33 : vector<4x1xf32>
    %35 = math.rsqrt %34 : vector<4x1xf32>
    %36 = vector.broadcast %35 : vector<4x1xf32> to vector<4x256xf32>
    %37 = arith.mulf %32, %36 : vector<4x256xf32>
    %38 = vector.broadcast %7 : vector<4x1xf32> to vector<4x256xf32>
    %39 = arith.mulf %37, %38 : vector<4x256xf32>
    %40 = vector.broadcast %8 : vector<4x1xf32> to vector<4x256xf32>
    %41 = arith.addf %39, %40 : vector<4x256xf32>
    %c0_13 = arith.constant 0 : index
    %c0_14 = arith.constant 0 : index
    %c0_15 = arith.constant 0 : index
    %42 = vector.load %arg5[%c0_13, %c0_14, %c0_15] : memref<1x4x256xf32, #tpu.memory_space<vmem>>, vector<1x4x256xf32>
    %43 = vector.shape_cast %42 : vector<1x4x256xf32> to vector<4x256xf32>
    %44 = vector.shape_cast %41 : vector<4x256xf32> to vector<1x4x256xf32>
    tpu.vector_store %arg5[%c0_13, %c0_14, %c0_15], %44 {strides = array<i32>} : memref<1x4x256xf32, #tpu.memory_space<vmem>>, vector<1x4x256xf32>,
    return
  }
  func.func @transform_0(%arg0: i32, %arg1: i32) -> (i32, i32, i32) {
    %c0_i32 = arith.constant 0 : i32
    %c0_i32_0 = arith.constant 0 : i32
    return %arg0, %arg1, %c0_i32 : i32, i32, i32
  }
  func.func @transform_1(%arg0: i32, %arg1: i32) -> (i32, i32) {
    %c0_i32 = arith.constant 0 : i32
    %c0_i32_0 = arith.constant 0 : i32
    %c0_i32_1 = arith.constant 0 : i32
    return %c0_i32, %c0_i32_0 : i32, i32
  }
  func.func @transform_2(%arg0: i32, %arg1: i32) -> (i32, i32, i32) {
    %c0_i32 = arith.constant 0 : i32
    %c0_i32_0 = arith.constant 0 : i32
    return %arg0, %arg1, %c0_i32 : i32, i32, i32
  }
  func.func @transform_3(%arg0: i32, %arg1: i32) -> (i32, i32, i32) {
    %c0_i32 = arith.constant 0 : i32
    %c0_i32_0 = arith.constant 0 : i32
    return %arg0, %arg1, %c0_i32 : i32, i32, i32
  }
}

</mosaic_0001>

<llo_original>
// kernel: tpu_custom_call.1
$region0: #{tpu_custom_call.1}
  #allocation0 [shape = 'u32[]', space=smem, size = 0x4, offset = 0x4, fixed_abs, tag = 'smem constant byte address 0x4 - core index']
  #allocation1 [shape = 'u32[144,128]{1,0:T(1,128)}', space=vmem, size = 0x12000, scoped, tag = 'internal scratch']
  %s0 = inlined_call_operand.hbm [shape: f32[2,4,256], index: 0, kind: input, shape index: {}]
  %s1 = inlined_call_operand.vmem [shape: f32[1,256], index: 1, kind: input, shape index: {}]
  %s2 = inlined_call_operand.hbm [shape: f32[2,4,4], index: 2, kind: input, shape index: {}]
  %s3 = inlined_call_operand.hbm [shape: f32[2,4,256], index: 3, kind: output, shape index: {}]
  %s4 = sld [smem:[#allocation0]]
  $region53: #{tpu_custom_call.1} parent=0
    _
  %s6 = ssub.s32 1, %s4
  %s7 = scalar_select 0, %s6, %s4
  $region1: #{tpu_custom_call.1} parent=0
    #allocation2 [shape = 'u8[8192]{0}', space=vmem, size = 0x2000, scoped, tag = 'input window, operand 0']
    #allocation3 [shape = 's32[2]{0}', space=sflag, size = 0x8, scoped, tag = 'scoped memory for tpu_custom_call.1']
    #allocation4 [shape = 's32[2]{0}', space=sflag, size = 0x8, scoped, tag = 'scoped memory for tpu_custom_call.1']
    #allocation5 [shape = 'u8[4096]{0}', space=vmem, size = 0x1000, scoped, tag = 'input window, operand 2']
    #allocation6 [shape = 's32[2]{0}', space=sflag, size = 0x8, scoped, tag = 'scoped memory for tpu_custom_call.1']
    #allocation7 [shape = 'u8[8192]{0}', space=vmem, size = 0x2000, scoped, tag = 'output window, operand 0']
    %8 = vsyncpa [#allocation3], 0
    %s9 = scalar_lea.sflag [#allocation3], 1
    %10 = vsyncpa %s9, 0
    %11 = vsyncpa [#allocation6], 0
    %s12 = scalar_lea.sflag [#allocation6], 1
    %13 = vsyncpa %s12, 0
    %14 = vsyncpa [#allocation4], 0
    %s15 = scalar_lea.sflag [#allocation4], 1
    %16 = vsyncpa %s15, 0
    loop: start=0, step=1, limit=4
    $region2: #{tpu_custom_call.1} parent=1 // loop_pre_header
      _
    $region3: #{tpu_custom_call.1} parent=1 // loop_header
      %s18 = sphi 0, %s22
      %p19 = scmp.ge.s32.totalorder %s18, 4
      %s25 = sphi 0, %s37
      %s26 = sphi 0, %s33
      %s27 = sphi 0, %s25
      %s28 = sphi 0, %s26
      %s29 = sphi 0, %s27
      %s30 = sphi 0, %s28
      %s42 = sphi 0, %s44
      %s45 = sphi 0, %s42
      %s46 = sphi 0, %s45
      %s62 = sphi 0, %s46
      %s66 = sphi 0, %s66
      %s68 = sphi 0, %s66
      %s69 = sphi 0, %s68
      %s83 = sphi 0, %s69
      %s91 = sphi 0, %s93
      %s94 = sphi 0, %s91
      %s95 = sphi 0, %s94
      %s111 = sphi 0, %s95
      %s119 = sphi 0, %s121
      %s122 = sphi 0, %s119
      %s123 = sphi 0, %s122
      %s139 = sphi 0, %s123
    $region4: #{tpu_custom_call.1} parent=1 // loop_header_branch
      %21 = sbr.rel (%p19) target = $region8
    $region5: #{tpu_custom_call.1} parent=1 // loop_body
      %s23 = ssub.s32 %s18, 1
      %s24 = ssub.s32 %s18, 2
      %s31 = sadd.s32 1, %s26
      %p32 = scmp.ge.s32.totalorder %s31, 1
      %s33 = scalar_select %p32, 0, %s31
      %s34 = sadd.s32 1, %s25
      %s35 = scalar_select %p32, %s34, %s25
      %p36 = scmp.ge.s32.totalorder %s35, 2
      %s37 = scalar_select %p36, 0, %s35
      %s38 = ssub.s32 %s25, %s37
      %s39 = ssub.s32 %s26, %s33
      %s40 = sor.u32 %s38, %s39
      %p41 = scmp.eq.s32.totalorder %s40, 0
      %s43 = sadd.s32 %s42, 1
      %s44 = scalar_select %p41, %s42, %s43
      %p47 = pneg %p41
      %p48 = scmp.eq.s32.totalorder %s18, 1
      %p49 = por %p47, %p48
      %p50 = scmp.ne.s32.totalorder %s42, %s45
      %p51 = scmp.eq.s32.totalorder %s18, 0
      %p52 = por %p50, %p51
      %p53 = scmp.ne.s32.totalorder %s42, %s45
      %p54 = scmp.eq.s32.totalorder %s23, 1
      %p55 = por %p53, %p54
      %p56 = scmp.ne.s32.totalorder %s45, %s46
      %p57 = scmp.eq.s32.totalorder %s23, 0
      %p58 = por %p56, %p57
      %p59 = scmp.ne.s32.totalorder %s45, %s46
      %p60 = scmp.eq.s32.totalorder %s24, 1
      %p61 = por %p59, %p60
      %p63 = scmp.ne.s32.totalorder %s46, %s62
      %p64 = scmp.eq.s32.totalorder %s24, 0
      %p65 = por %p63, %p64
      %s67 = sadd.s32 %s66, 1
      %p70 = scmp.eq.s32.totalorder %s18, 1
      %p71 = scmp.ne.s32.totalorder %s66, %s68
      %p72 = scmp.eq.s32.totalorder %s18, 0
      %p73 = por %p71, %p72
      %p74 = scmp.ne.s32.totalorder %s66, %s68
      %p75 = scmp.eq.s32.totalorder %s23, 1
      %p76 = por %p74, %p75
      %p77 = scmp.ne.s32.totalorder %s68, %s69
      %p78 = scmp.eq.s32.totalorder %s23, 0
      %p79 = por %p77, %p78
      %p80 = scmp.ne.s32.totalorder %s68, %s69
      %p81 = scmp.eq.s32.totalorder %s24, 1
      %p82 = por %p80, %p81
      %p84 = scmp.ne.s32.totalorder %s69, %s83
      %p85 = scmp.eq.s32.totalorder %s24, 0
      %p86 = por %p84, %p85
      %s87 = ssub.s32 %s25, %s37
      %s88 = ssub.s32 %s26, %s33
      %s89 = sor.u32 %s87, %s88
      %p90 = scmp.eq.s32.totalorder %s89, 0
      %s92 = sadd.s32 %s91, 1
      %s93 = scalar_select %p90, %s91, %s92
      %p96 = pneg %p90
      %p97 = scmp.eq.s32.totalorder %s18, 1
      %p98 = por %p96, %p97
      %p99 = scmp.ne.s32.totalorder %s91, %s94
      %p100 = scmp.eq.s32.totalorder %s18, 0
      %p101 = por %p99, %p100
      %p102 = scmp.ne.s32.totalorder %s91, %s94
      %p103 = scmp.eq.s32.totalorder %s23, 1
      %p104 = por %p102, %p103
      %p105 = scmp.ne.s32.totalorder %s94, %s95
      %p106 = scmp.eq.s32.totalorder %s23, 0
      %p107 = por %p105, %p106
      %p108 = scmp.ne.s32.totalorder %s94, %s95
      %p109 = scmp.eq.s32.totalorder %s24, 1
      %p110 = por %p108, %p109
      %p112 = scmp.ne.s32.totalorder %s95, %s111
      %p113 = scmp.eq.s32.totalorder %s24, 0
      %p114 = por %p112, %p113
      %s115 = ssub.s32 %s25, %s37
      %s116 = ssub.s32 %s26, %s33
      %s117 = sor.u32 %s115, %s116
      %p118 = scmp.eq.s32.totalorder %s117, 0
      %s120 = sadd.s32 %s119, 1
      %s121 = scalar_select %p118, %s119, %s120
      %p124 = pneg %p118
      %p125 = scmp.eq.s32.totalorder %s18, 1
      %p126 = por %p124, %p125
      %p127 = scmp.ne.s32.totalorder %s119, %s122
      %p128 = scmp.eq.s32.totalorder %s18, 0
      %p129 = por %p127, %p128
      %p130 = scmp.ne.s32.totalorder %s119, %s122
      %p131 = scmp.eq.s32.totalorder %s23, 1
      %p132 = por %p130, %p131
      %p133 = scmp.ne.s32.totalorder %s122, %s123
      %p134 = scmp.eq.s32.totalorder %s23, 0
      %p135 = por %p133, %p134
      %p136 = scmp.ne.s32.totalorder %s122, %s123
      %p137 = scmp.eq.s32.totalorder %s24, 1
      %p138 = por %p136, %p137
      %p140 = scmp.ne.s32.totalorder %s123, %s139
      %p141 = scmp.eq.s32.totalorder %s24, 0
      %p142 = por %p140, %p141
      %p143 = scmp.le.s32.totalorder 1, %s18
      %p144 = scmp.lt.s32.totalorder %s18, 3
      %p145 = pnand %p143, %p144
      %p146 = pneg %p145
      // Predicated region
      $region9: #{tpu_custom_call.1} parent=5 // pred_check
        _
      $region10: #{tpu_custom_call.1} parent=5 // pred_check_branch
        %148 = sbr.rel (%p145) target = $region12
      $region11: #{tpu_custom_call.1} parent=5 // pred_region
        %s149 = ssub.s32 %s18, 1
        // Predicated region
        $region13: #{tpu_custom_call.1} parent=11 // pred_check
          %p150 = pneg %p79
        $region14: #{tpu_custom_call.1} parent=11 // pred_check_branch
          %152 = sbr.rel (%p150) target = $region16
        $region15: #{tpu_custom_call.1} parent=11 // pred_region
          _
        $region16: #{tpu_custom_call.1} parent=11 // pred_fallthru
          _
      $region12: #{tpu_custom_call.1} parent=5 // pred_fallthru
        _
      %p153 = scmp.lt.s32.totalorder %s18, 2
      // Predicated region
      $region17: #{tpu_custom_call.1} parent=5 // pred_check
        %p154 = pneg %p153
      $region18: #{tpu_custom_call.1} parent=5 // pred_check_branch
        %156 = sbr.rel (%p154) target = $region20
      $region19: #{tpu_custom_call.1} parent=5 // pred_region
        // Predicated region
        $region21: #{tpu_custom_call.1} parent=19 // pred_check
          %p157 = pneg %p52
        $region22: #{tpu_custom_call.1} parent=19 // pred_check_branch
          %159 = sbr.rel (%p157) target = $region24
        $region23: #{tpu_custom_call.1} parent=19 // pred_region
          %s160 = sand.u32 %s42, 1
          %s161 = scalar_lea.sflag [#allocation3], %s160
          %s162 = sand.u32 %s42, 1
          %s163 = smul.addr %s162, 8
          %s164 = scalar_lea.vmem [#allocation2], %s163
          %s166 = ssub.s32 128, 128
          %167 = vsyncadd %s161, %s166
          %s168 = smul.addr %s26, 2
          %s169 = smul.addr %s25, 2
          %s170 = sadd.s32 %s168, %s169
          %s171 = smul.addr %s170, 64
          %s172 = scalar_lea.hbm %s0, %s171
          %s174 = sshll.u32 %s164, 4
          %s175 = int_to_ptr.vmem [resolvable:$true] %s174
          %177 = dma.hbm_to_vmem [thread:$0]  %s172, 128, %s175, %s161
        $region24: #{tpu_custom_call.1} parent=19 // pred_fallthru
          _
        // Predicated region
        $region25: #{tpu_custom_call.1} parent=19 // pred_check
          %p178 = pneg %p101
        $region26: #{tpu_custom_call.1} parent=19 // pred_check_branch
          %180 = sbr.rel (%p178) target = $region28
        $region27: #{tpu_custom_call.1} parent=19 // pred_region
          %s181 = sand.u32 %s91, 1
          %s182 = scalar_lea.sflag [#allocation6], %s181
          %s183 = sand.u32 %s91, 1
          %s184 = smul.addr %s183, 4
          %s185 = scalar_lea.vmem [#allocation5], %s184
          %s187 = ssub.s32 64, 64
          %188 = vsyncadd %s182, %s187
          %s189 = sadd.s32 %s26, %s25
          %s190 = smul.addr %s189, 64
          %s191 = scalar_lea.hbm %s2, %s190
          %s193 = sshll.u32 %s185, 4
          %s194 = int_to_ptr.vmem [resolvable:$true] %s193
          %196 = dma.hbm_to_vmem [thread:$0]  %s191, 64, %s194, %s182
        $region28: #{tpu_custom_call.1} parent=19 // pred_fallthru
          _
      $region20: #{tpu_custom_call.1} parent=5 // pred_fallthru
        _
      %p197 = scmp.le.s32.totalorder 1, %s18
      %p198 = scmp.lt.s32.totalorder %s18, 3
      %p199 = pnand %p197, %p198
      %p200 = pneg %p199
      // Predicated region
      $region29: #{tpu_custom_call.1} parent=5 // pred_check
        _
      $region30: #{tpu_custom_call.1} parent=5 // pred_check_branch
        %202 = sbr.rel (%p199) target = $region32
      $region31: #{tpu_custom_call.1} parent=5 // pred_region
        %s203 = ssub.s32 %s18, 1
        %s204 = sand.u32 %s45, 1
        %s205 = scalar_lea.sflag [#allocation3], %s204
        %s206 = sand.u32 %s45, 1
        %s207 = smul.addr %s206, 8
        %s208 = scalar_lea.vmem [#allocation2], %s207
        // Predicated region
        $region33: #{tpu_custom_call.1} parent=31 // pred_check
          %p209 = pneg %p58
        $region34: #{tpu_custom_call.1} parent=31 // pred_check_branch
          %211 = sbr.rel (%p209) target = $region36
        $region35: #{tpu_custom_call.1} parent=31 // pred_region
          %212 = dma.done %s205, 128
        $region36: #{tpu_custom_call.1} parent=31 // pred_fallthru
          _
        %s213 = sand.u32 %s94, 1
        %s214 = scalar_lea.sflag [#allocation6], %s213
        %s215 = sand.u32 %s94, 1
        %s216 = smul.addr %s215, 4
        %s217 = scalar_lea.vmem [#allocation5], %s216
        // Predicated region
        $region37: #{tpu_custom_call.1} parent=31 // pred_check
          %p218 = pneg %p107
        $region38: #{tpu_custom_call.1} parent=31 // pred_check_branch
          %220 = sbr.rel (%p218) target = $region40
        $region39: #{tpu_custom_call.1} parent=31 // pred_region
          %221 = dma.done %s214, 64
        $region40: #{tpu_custom_call.1} parent=31 // pred_fallthru
          _
        %s222 = sand.u32 %s45, 1
        %s223 = scalar_lea.sflag [#allocation3], %s222
        %s224 = sand.u32 %s45, 1
        %s225 = smul.addr %s224, 8
        %s226 = scalar_lea.vmem [#allocation2], %s225
        %p227 = pneg %p58
        %p228 = pneg %p55
        %p229 = pneg %p79
        %p230 = pneg %p76
        %s231 = sand.u32 %s94, 1
        %s232 = scalar_lea.sflag [#allocation6], %s231
        %s233 = sand.u32 %s94, 1
        %s234 = smul.addr %s233, 4
        %s235 = scalar_lea.vmem [#allocation5], %s234
        %p236 = pneg %p107
        %p237 = pneg %p104
        %p238 = pneg %p135
        %p239 = pneg %p132
        %s240 = sand.u32 %s122, 1
        %s241 = scalar_lea.sflag [#allocation4], %s240
        %s242 = sand.u32 %s122, 1
        %s243 = smul.addr %s242, 8
        %s244 = scalar_lea.vmem [#allocation7], %s243
        %v245 = vld [vmem:[%s208] sm:$0xff]
        %v246 = vld [vmem:[%s1] sm:$0x3]
        %v247 = vld [vmem:[%s217] sm:$0xf]
        %v249 = vlaneseq
        %v250 = vshrl.u32 %v249, 7
        %v251 = vsub.s32 0, %v250
        %v252 = vrot.slane %v246, %v251
        %v253 = vlaneseq
        %v254 = vshrl.u32 %v253, 7
        %v255 = vsub.s32 1, %v254
        %v256 = vrot.slane %v246, %v255
        %260 = vset.pattern.permute.xlu0 0
        %261 = vperm.xlu0 %260, %v247
        %v262 = vpop.permute.xlu0 %261
        %v264 = vmul.f32 %v252, %v262
        %v265 = vmul.f32 %v256, %v262
        %v268 = vcombine.low %v264, %v265
        %v270 = vadd.f32 %v245, %v268
        %271 = vset.pattern.permute.xlu0 1
        %272 = vperm.xlu0 %271, %v247
        %v273 = vpop.permute.xlu0 %272
        %v275 = vunpack.c.l.s4 839922192
        %v276 = vunpack.c.0.s8 %v275
        %v277 = vlaneseq
        %v278 = vshrl.u32 %v277, 7
        %v279 = vsub.s32 %v276, %v278
        %v280 = vrot.slane %v273, %v279
        %v282 = vadd.f32 %v270, %v280
        %v283 = vmul.f32 %v282, 0.2
        %v284 = vmax.f32 %v282, %v283
        %v286 = vcombine.high %v284, %v284
        %vm288 = vcmask 1043456
        %v289 = vsel %vm288, %v284, 0.0
        %v290 = vsel %vm288, %v286, 0.0
        %v291 = vadd.f32 %v289, %v290
        %292 = vadd.xlane.f32.xlu0 %v291
        %v293 = vpop.xlane.xlu0 %292
        %v294 = vmul.f32 %v293, 0.00390625
        %v295 = vmul.f32 %v284, %v284
        %v297 = vcombine.high %v295, %v295
        %v299 = vsel %vm288, %v295, 0.0
        %v300 = vsel %vm288, %v297, 0.0
        %v301 = vadd.f32 %v299, %v300
        %302 = vadd.xlane.f32.xlu0 %v301
        %v303 = vpop.xlane.xlu0 %302
        %v304 = vmul.f32 %v303, 0.00390625
        %v305 = vmul.f32 %v294, %v294
        %v306 = vsub.f32 %v304, %v305
        %v307 = vmax.f32 %v306, 0.0
        %v310 = vunpack.c.l.s4 839922192
        %v311 = vunpack.c.0.s8 %v310
        %v312 = vlaneseq
        %v313 = vshrl.u32 %v312, 7
        %v314 = vsub.s32 %v311, %v313
        %v315 = vrot.slane %v294, %v314
        %v317 = vsub.f32 %v284, %v315
        %v318 = vadd.f32 %v307, 1e-08
        %v319 = vrsqrt.pop %v318
        %v322 = vunpack.c.l.s4 839922192
        %v323 = vunpack.c.0.s8 %v322
        %v324 = vlaneseq
        %v325 = vshrl.u32 %v324, 7
        %v326 = vsub.s32 %v323, %v325
        %v327 = vrot.slane %v319, %v326
        %v329 = vmul.f32 %v317, %v327
        %330 = vset.pattern.permute.xlu0 2
        %331 = vperm.xlu0 %330, %v247
        %v332 = vpop.permute.xlu0 %331
        %v334 = vunpack.c.l.s4 839922192
        %v335 = vunpack.c.0.s8 %v334
        %v336 = vlaneseq
        %v337 = vshrl.u32 %v336, 7
        %v338 = vsub.s32 %v335, %v337
        %v339 = vrot.slane %v332, %v338
        %v341 = vmul.f32 %v329, %v339
        %342 = vset.pattern.permute.xlu0 3
        %343 = vperm.xlu0 %342, %v247
        %v344 = vpop.permute.xlu0 %343
        %v346 = vunpack.c.l.s4 839922192
        %v347 = vunpack.c.0.s8 %v346
        %v348 = vlaneseq
        %v349 = vshrl.u32 %v348, 7
        %v350 = vsub.s32 %v347, %v349
        %v351 = vrot.slane %v344, %v350
        %v353 = vadd.f32 %v341, %v351
        %354 = vst [vmem:[%s244] sm:$0xff] %v353
        %s355 = sand.u32 %s122, 1
        %s356 = scalar_lea.sflag [#allocation4], %s355
        %s357 = sand.u32 %s122, 1
        %s358 = smul.addr %s357, 8
        %s359 = scalar_lea.vmem [#allocation7], %s358
        // Predicated region
        $region41: #{tpu_custom_call.1} parent=31 // pred_check
          %p360 = pneg %p132
        $region42: #{tpu_custom_call.1} parent=31 // pred_check_branch
          %362 = sbr.rel (%p360) target = $region44
        $region43: #{tpu_custom_call.1} parent=31 // pred_region
          %s364 = ssub.s32 128, 128
          %365 = vsyncadd %s356, %s364
          %s366 = smul.addr %s28, 2
          %s367 = smul.addr %s27, 2
          %s368 = sadd.s32 %s366, %s367
          %s369 = smul.addr %s368, 64
          %s370 = scalar_lea.hbm %s3, %s369
          %s372 = sshll.u32 %s359, 4
          %s373 = int_to_ptr.vmem [resolvable:$true] %s372
          %375 = dma.vmem_to_hbm [thread:$0]  %s373, 128, %s370, %s356
        $region44: #{tpu_custom_call.1} parent=31 // pred_fallthru
          _
      $region32: #{tpu_custom_call.1} parent=5 // pred_fallthru
        _
      %p376 = scmp.le.s32.totalorder 2, %s18
      // Predicated region
      $region45: #{tpu_custom_call.1} parent=5 // pred_check
        %p377 = pneg %p376
      $region46: #{tpu_custom_call.1} parent=5 // pred_check_branch
        %379 = sbr.rel (%p377) target = $region48
      $region47: #{tpu_custom_call.1} parent=5 // pred_region
        %s380 = ssub.s32 %s18, 2
        // Predicated region
        $region49: #{tpu_custom_call.1} parent=47 // pred_check
          %p381 = pneg %p138
        $region50: #{tpu_custom_call.1} parent=47 // pred_check_branch
          %383 = sbr.rel (%p381) target = $region52
        $region51: #{tpu_custom_call.1} parent=47 // pred_region
          %s384 = sand.u32 %s123, 1
          %s385 = scalar_lea.sflag [#allocation4], %s384
          %s386 = sand.u32 %s123, 1
          %s387 = smul.addr %s386, 8
          %s388 = scalar_lea.vmem [#allocation7], %s387
          %389 = dma.done %s385, 128
        $region52: #{tpu_custom_call.1} parent=47 // pred_fallthru
          _
      $region48: #{tpu_custom_call.1} parent=5 // pred_fallthru
        _
    $region6: #{tpu_custom_call.1} parent=1 // loop_footer
      %s22 = sadd.s32 1, %s18
    $region7: #{tpu_custom_call.1} parent=1 // loop_footer_branch
      %17 = sbr.rel target = $region3
    $region8: #{tpu_custom_call.1} parent=1 // loop_exit
      _
    %390 = vsyncpa [#allocation3], 1
    %s391 = scalar_lea.sflag [#allocation3], 1
    %392 = vsyncpa %s391, 1
    %393 = vsyncpa [#allocation6], 1
    %s394 = scalar_lea.sflag [#allocation6], 1
    %395 = vsyncpa %s394, 1
    %396 = vsyncpa [#allocation4], 1
    %s397 = scalar_lea.sflag [#allocation4], 1
    %398 = vsyncpa %s397, 1

</llo_original>
